<compile_context>
chip_gen: v7x
topology: tpu7x:2x2x1
jax: 0.10.0
libtpu: 0.0.40
codegen_flags: <defaults>
</compile_context>

<pallas_src>
import functools

import jax
import jax.numpy as jnp
from jax.experimental import pallas as pl
from jax.experimental.pallas import tpu as pltpu


def _round_up(n, m):
    return -(-n // m) * m


def _pick_batch_tile(B, per_batch_bytes, target_bytes=2 << 20, min_split_bytes=1 << 20):
    """Largest batch chunk (dividing B) whose padded block stays under target_bytes.

    Prefers >= 2 grid steps (v7x has 2 TensorCores) as long as each block stays
    >= ~512 KiB so the ~0.35us per-step overhead remains negligible.
    """
    tb = max(1, min(B, target_bytes // max(per_batch_bytes, 1)))
    while B % tb:                      # only full blocks -> no edge masking concerns
        tb -= 1
    if tb == B and B > 1 and B * per_batch_bytes >= min_split_bytes:
        half = B // 2
        while B % half:
            half -= 1
        tb = half
    return tb


def _rsoftmax_kernel(x_ref, o_ref, *, radix):
    # x_ref: (tb, card, radix, inner)   natural input layout
    # o_ref: (tb, radix, card, inner)   radix-major output layout (PyTorch transpose)
    # Per-radix ref slices keep everything in one (card=sublane, inner=lane) layout:
    # the permutation is pure addressing, and the radix reduction unrolls into
    # elementwise maximum/add (radix is a small static constant).
    xs = [x_ref[:, :, r, :].astype(jnp.float32) for r in range(radix)]
    m = xs[0]
    for xr in xs[1:]:
        m = jnp.maximum(m, xr)
    es = [jnp.exp(xr - m) for xr in xs]
    s = es[0]
    for er in es[1:]:
        s = s + er
    inv = pl.reciprocal(s, approx=True)          # EUP slot; avoids a VPU divide
    for r in range(radix):
        o_ref[:, r, :, :] = (es[r] * inv).astype(o_ref.dtype)


def _sigmoid_kernel(x_ref, o_ref):
    o_ref[...] = jax.nn.sigmoid(x_ref[...].astype(jnp.float32)).astype(o_ref.dtype)


def rsoftmax(x, radix, cardinality):
    """Pallas rSoftMax. x: (B, C, H, W).
    Returns (B, C*H*W) if radix > 1 (matching PyTorch's reshape), else (B, C, H, W)."""
    B, C, H, W = x.shape
    itemsize = jnp.dtype(x.dtype).itemsize

    if radix > 1:
        if (C * H * W) % (radix * cardinality):
            raise ValueError("C*H*W must be divisible by radix*cardinality")
        inner = (C * H * W) // (radix * cardinality)

        # Free reshape: the card<->radix swap happens inside the kernel.
        xr = x.reshape(B, cardinality, radix, inner)

        # Padded VMEM footprint per batch element (input + output blocks, (8,128) tiles).
        per_batch = (
            cardinality * _round_up(radix, 8) * _round_up(inner, 128)
            + radix * _round_up(cardinality, 8) * _round_up(inner, 128)
        ) * itemsize
        tb = _pick_batch_tile(B, per_batch)

        out = pl.pallas_call(
            functools.partial(_rsoftmax_kernel, radix=radix),
            out_shape=jax.ShapeDtypeStruct((B, radix, cardinality, inner), x.dtype),
            grid_spec=pl.GridSpec(
                grid=(B // tb,),
                in_specs=[
                    pl.BlockSpec((tb, cardinality, radix, inner),
                                 lambda b: (b, 0, 0, 0)),
                ],
                out_specs=pl.BlockSpec((tb, radix, cardinality, inner),
                                       lambda b: (b, 0, 0, 0)),
            ),
            compiler_params=pltpu.CompilerParams(
                dimension_semantics=("parallel",)),
            # No input/output aliasing here: input and output shapes differ
            # ((B,card,radix,inner) vs (B,radix,card,inner)).
        )(xr)
        # Output is already radix-major contiguous -> this reshape is free.
        return out.reshape(B, -1)

    # radix == 1: plain sigmoid, row-tiled (never a single whole-array block).
    chw = C * H * W
    xf = x.reshape(B, chw)
    per_row = 2 * _round_up(chw, 128) * itemsize
    tb = _pick_batch_tile(B, per_row)
    out = pl.pallas_call(
        _sigmoid_kernel,
        out_shape=jax.ShapeDtypeStruct((B, chw), x.dtype),
        grid_spec=pl.GridSpec(
            grid=(B // tb,),
            in_specs=[pl.BlockSpec((tb, chw), lambda i: (i, 0))],
            out_specs=pl.BlockSpec((tb, chw), lambda i: (i, 0)),
        ),
        compiler_params=pltpu.CompilerParams(dimension_semantics=("parallel",)),
        input_output_aliases={0: 0},   # pure elementwise, same shape/dtype: reuse buffer
    )(xf)
    return out.reshape(B, C, H, W)


def _reference(x, radix, cardinality):
    B = x.shape[0]
    if radix > 1:
        xr = x.reshape(B, cardinality, radix, -1)
        xr = jnp.transpose(xr, (0, 2, 1, 3))
        xr = jax.nn.softmax(xr.astype(jnp.float32), axis=1).astype(x.dtype)
        return xr.reshape(B, -1)
    return jax.nn.sigmoid(x.astype(jnp.float32)).astype(x.dtype)


if __name__ == "__main__":
    key = jax.random.PRNGKey(0)
    k1, k2, k3 = jax.random.split(key, 3)

    # 1) radix > 1, small config: B=2, cardinality=4, radix=2, inner=16 -> C=128
    radix, card, inner, B = 2, 4, 16, 2
    C = radix * card * inner
    x = jax.random.normal(k1, (B, C, 1, 1), dtype=jnp.float32)
    out = jax.block_until_ready(rsoftmax(x, radix, card))
    ref = _reference(x, radix, card)
    assert out.shape == (B, C), out.shape
    # approx reciprocal (EUP) -> slightly looser tolerance on values in [0, 1]
    assert jnp.allclose(out, ref, atol=2e-3, rtol=2e-3)

    # 2) radix > 1, lane-dense config: B=4, cardinality=2, radix=4, inner=128 -> C=1024
    radix, card, inner, B = 4, 2, 128, 4
    C = radix * card * inner
    x2 = jax.random.normal(k2, (B, C, 1, 1), dtype=jnp.float32)
    out2 = jax.block_until_ready(rsoftmax(x2, radix, card))
    ref2 = _reference(x2, radix, card)
    assert out2.shape == (B, C), out2.shape
    assert jnp.allclose(out2, ref2, atol=2e-3, rtol=2e-3)

    # 3) radix == 1 path (sigmoid), with spatial dims
    x3 = jax.random.normal(k3, (2, 8, 4, 4), dtype=jnp.float32)
    out3 = jax.block_until_ready(rsoftmax(x3, 1, card))
    assert out3.shape == x3.shape
    assert jnp.allclose(out3, _reference(x3, 1, card), atol=1e-6)

    print("KERNEL_OK")
</pallas_src>

<mosaic_0001>
module attributes {stable_mosaic.version = 11 : i64} {
  func.func @_rsoftmax_kernel(%arg0: i32, %arg1: memref<2x4x2x16xf32, #tpu.memory_space<vmem>>, %arg2: memref<2x2x4x16xf32, #tpu.memory_space<vmem>>) attributes {dimension_semantics = [#tpu.dimension_semantics<parallel>], iteration_bounds = array<i64: 1>, scalar_prefetch = 0 : i64, scratch_operands = 0 : i64, tpu.core_type = #tpu.core_type<tc>, window_params = [{transform_indices = @transform_0, window_bounds = array<i64: 2, 4, 2, 16>}, {transform_indices = @transform_1, window_bounds = array<i64: 2, 2, 4, 16>}]} {
    %c0 = arith.constant 0 : index
    %c0_0 = arith.constant 0 : index
    %c0_1 = arith.constant 0 : index
    %c0_2 = arith.constant 0 : index
    %0 = vector.load %arg1[%c0, %c0_0, %c0_1, %c0_2] : memref<2x4x2x16xf32, #tpu.memory_space<vmem>>, vector<2x4x1x16xf32>
    %1 = vector.shape_cast %0 : vector<2x4x1x16xf32> to vector<2x4x16xf32>
    %c0_3 = arith.constant 0 : index
    %c0_4 = arith.constant 0 : index
    %c1 = arith.constant 1 : index
    %c0_5 = arith.constant 0 : index
    %2 = vector.load %arg1[%c0_3, %c0_4, %c1, %c0_5] : memref<2x4x2x16xf32, #tpu.memory_space<vmem>>, vector<2x4x1x16xf32>
    %3 = vector.shape_cast %2 : vector<2x4x1x16xf32> to vector<2x4x16xf32>
    %4 = arith.maximumf %1, %3 : vector<2x4x16xf32>
    %5 = arith.subf %1, %4 : vector<2x4x16xf32>
    %6 = math.exp %5 : vector<2x4x16xf32>
    %7 = arith.subf %3, %4 : vector<2x4x16xf32>
    %8 = math.exp %7 : vector<2x4x16xf32>
    %9 = arith.addf %6, %8 : vector<2x4x16xf32>
    %10 = tpu.reciprocal %9 {approx = true} : vector<2x4x16xf32> -> vector<2x4x16xf32>
    %11 = arith.mulf %6, %10 : vector<2x4x16xf32>
    %c0_6 = arith.constant 0 : index
    %c0_7 = arith.constant 0 : index
    %c0_8 = arith.constant 0 : index
    %c0_9 = arith.constant 0 : index
    %12 = vector.load %arg2[%c0_6, %c0_7, %c0_8, %c0_9] : memref<2x2x4x16xf32, #tpu.memory_space<vmem>>, vector<2x1x4x16xf32>
    %13 = vector.shape_cast %12 : vector<2x1x4x16xf32> to vector<2x4x16xf32>
    %14 = vector.shape_cast %11 : vector<2x4x16xf32> to vector<2x1x4x16xf32>
    tpu.vector_store %arg2[%c0_6, %c0_7, %c0_8, %c0_9], %14 {strides = array<i32>} : memref<2x2x4x16xf32, #tpu.memory_space<vmem>>, vector<2x1x4x16xf32>,
    %15 = arith.mulf %8, %10 : vector<2x4x16xf32>
    %c0_10 = arith.constant 0 : index
    %c1_11 = arith.constant 1 : index
    %c0_12 = arith.constant 0 : index
    %c0_13 = arith.constant 0 : index
    %16 = vector.load %arg2[%c0_10, %c1_11, %c0_12, %c0_13] : memref<2x2x4x16xf32, #tpu.memory_space<vmem>>, vector<2x1x4x16xf32>
    %17 = vector.shape_cast %16 : vector<2x1x4x16xf32> to vector<2x4x16xf32>
    %18 = vector.shape_cast %15 : vector<2x4x16xf32> to vector<2x1x4x16xf32>
    tpu.vector_store %arg2[%c0_10, %c1_11, %c0_12, %c0_13], %18 {strides = array<i32>} : memref<2x2x4x16xf32, #tpu.memory_space<vmem>>, vector<2x1x4x16xf32>,
    return
  }
  func.func @transform_0(%arg0: i32) -> (i32, i32, i32, i32) {
    %c0_i32 = arith.constant 0 : i32
    %c0_i32_0 = arith.constant 0 : i32
    %c0_i32_1 = arith.constant 0 : i32
    %c0_i32_2 = arith.constant 0 : i32
    return %arg0, %c0_i32, %c0_i32_0, %c0_i32_1 : i32, i32, i32, i32
  }
  func.func @transform_1(%arg0: i32) -> (i32, i32, i32, i32) {
    %c0_i32 = arith.constant 0 : i32
    %c0_i32_0 = arith.constant 0 : i32
    %c0_i32_1 = arith.constant 0 : i32
    %c0_i32_2 = arith.constant 0 : i32
    return %arg0, %c0_i32, %c0_i32_0, %c0_i32_1 : i32, i32, i32, i32
  }
}

</mosaic_0001>

<llo_original>
// kernel: tpu_custom_call.1
$region0: #{tpu_custom_call.1}
  #allocation0 [shape = 'u32[]', space=smem, size = 0x4, offset = 0x4, fixed_abs, tag = 'smem constant byte address 0x4 - core index']
  #allocation1 [shape = 'u32[144,128]{1,0:T(1,128)}', space=vmem, size = 0x12000, scoped, tag = 'internal scratch']
  %s0 = inlined_call_operand.hbm [shape: f32[2,4,2,16], index: 0, kind: input, shape index: {}]
  %s1 = inlined_call_operand.hbm [shape: f32[2,2,4,16], index: 1, kind: output, shape index: {}]
  %s2 = sld [smem:[#allocation0]]
  $region18: #{tpu_custom_call.1} parent=0
    _
  %s4 = ssub.s32 1, %s2
  %s5 = scalar_select 0, %s4, %s2
  $region1: #{tpu_custom_call.1} parent=0
    #allocation2 [shape = 'u8[8192]{0}', space=vmem, size = 0x2000, scoped, tag = 'input window, operand 0, single buffered']
    #allocation3 [shape = 's32[1]{0}', space=sflag, size = 0x4, scoped, tag = 'scoped memory for tpu_custom_call.1']
    #allocation4 [shape = 's32[1]{0}', space=sflag, size = 0x4, scoped, tag = 'scoped memory for tpu_custom_call.1']
    #allocation5 [shape = 'u8[8192]{0}', space=vmem, size = 0x2000, scoped, tag = 'output window, operand 0, single buffered']
    %6 = vsyncpa [#allocation3], 0
    %7 = vsyncpa [#allocation4], 0
    // Predicated region
    $region2: #{tpu_custom_call.1} parent=1 // pred_check
      _
    $region3: #{tpu_custom_call.1} parent=1 // pred_check_branch
      %9 = sbr.rel (0) target = $region5
    $region4: #{tpu_custom_call.1} parent=1 // pred_region
      %s11 = ssub.s32 256, 256
      %12 = vsyncadd [#allocation3], %s11
      %s13 = sshll.u32 [#allocation2], 4
      %s14 = int_to_ptr.vmem [resolvable:$true] %s13
      %19 = dma.hbm_to_vmem [thread:$0]  %s0, 256, %s14, [#allocation3], 32, 32, 2
    $region5: #{tpu_custom_call.1} parent=1 // pred_fallthru
      _
    // Predicated region
    $region6: #{tpu_custom_call.1} parent=1 // pred_check
      _
    $region7: #{tpu_custom_call.1} parent=1 // pred_check_branch
      %21 = sbr.rel (0) target = $region9
    $region8: #{tpu_custom_call.1} parent=1 // pred_region
      %22 = dma.done [#allocation3], 256
    $region9: #{tpu_custom_call.1} parent=1 // pred_fallthru
      _
    %v23 = vld [vmem:[#allocation2] sm:$0x1]
    %v24 = vld [vmem:[#allocation2 + $0x2] sm:$0x1]
    %v25 = vld [vmem:[#allocation2 + $0x4] sm:$0x1]
    %v26 = vld [vmem:[#allocation2 + $0x6] sm:$0x1]
    %v27 = vld [vmem:[#allocation2 + $0x8] sm:$0x1]
    %v28 = vld [vmem:[#allocation2 + $0xa] sm:$0x1]
    %v29 = vld [vmem:[#allocation2 + $0xc] sm:$0x1]
    %v30 = vld [vmem:[#allocation2 + $0xe] sm:$0x1]
    %v31 = vld [vmem:[#allocation2 + $0x1] sm:$0x1]
    %v32 = vld [vmem:[#allocation2 + $0x3] sm:$0x1]
    %v33 = vld [vmem:[#allocation2 + $0x5] sm:$0x1]
    %v34 = vld [vmem:[#allocation2 + $0x7] sm:$0x1]
    %v35 = vld [vmem:[#allocation2 + $0x9] sm:$0x1]
    %v36 = vld [vmem:[#allocation2 + $0xb] sm:$0x1]
    %v37 = vld [vmem:[#allocation2 + $0xd] sm:$0x1]
    %v38 = vld [vmem:[#allocation2 + $0xf] sm:$0x1]
    %v39 = vmax.f32 %v23, %v31
    %v40 = vmax.f32 %v24, %v32
    %v41 = vmax.f32 %v25, %v33
    %v42 = vmax.f32 %v26, %v34
    %v43 = vmax.f32 %v27, %v35
    %v44 = vmax.f32 %v28, %v36
    %v45 = vmax.f32 %v29, %v37
    %v46 = vmax.f32 %v30, %v38
    %v47 = vsub.f32 %v23, %v39
    %v48 = vsub.f32 %v24, %v40
    %v49 = vsub.f32 %v25, %v41
    %v50 = vsub.f32 %v26, %v42
    %v51 = vsub.f32 %v27, %v43
    %v52 = vsub.f32 %v28, %v44
    %v53 = vsub.f32 %v29, %v45
    %v54 = vsub.f32 %v30, %v46
    %v55 = vmul.f32 %v47, 1.442695
    %v56 = vpow.pop %v55
    %v57 = vmul.f32 %v48, 1.442695
    %v58 = vpow.pop %v57
    %v59 = vmul.f32 %v49, 1.442695
    %v60 = vpow.pop %v59
    %v61 = vmul.f32 %v50, 1.442695
    %v62 = vpow.pop %v61
    %v63 = vmul.f32 %v51, 1.442695
    %v64 = vpow.pop %v63
    %v65 = vmul.f32 %v52, 1.442695
    %v66 = vpow.pop %v65
    %v67 = vmul.f32 %v53, 1.442695
    %v68 = vpow.pop %v67
    %v69 = vmul.f32 %v54, 1.442695
    %v70 = vpow.pop %v69
    %v71 = vsub.f32 %v31, %v39
    %v72 = vsub.f32 %v32, %v40
    %v73 = vsub.f32 %v33, %v41
    %v74 = vsub.f32 %v34, %v42
    %v75 = vsub.f32 %v35, %v43
    %v76 = vsub.f32 %v36, %v44
    %v77 = vsub.f32 %v37, %v45
    %v78 = vsub.f32 %v38, %v46
    %v79 = vmul.f32 %v71, 1.442695
    %v80 = vpow.pop %v79
    %v81 = vmul.f32 %v72, 1.442695
    %v82 = vpow.pop %v81
    %v83 = vmul.f32 %v73, 1.442695
    %v84 = vpow.pop %v83
    %v85 = vmul.f32 %v74, 1.442695
    %v86 = vpow.pop %v85
    %v87 = vmul.f32 %v75, 1.442695
    %v88 = vpow.pop %v87
    %v89 = vmul.f32 %v76, 1.442695
    %v90 = vpow.pop %v89
    %v91 = vmul.f32 %v77, 1.442695
    %v92 = vpow.pop %v91
    %v93 = vmul.f32 %v78, 1.442695
    %v94 = vpow.pop %v93
    %v95 = vadd.f32 %v56, %v80
    %v96 = vadd.f32 %v58, %v82
    %v97 = vadd.f32 %v60, %v84
    %v98 = vadd.f32 %v62, %v86
    %v99 = vadd.f32 %v64, %v88
    %v100 = vadd.f32 %v66, %v90
    %v101 = vadd.f32 %v68, %v92
    %v102 = vadd.f32 %v70, %v94
    %v103 = vrcp.pop %v95
    %v104 = vrcp.pop %v96
    %v105 = vrcp.pop %v97
    %v106 = vrcp.pop %v98
    %v107 = vrcp.pop %v99
    %v108 = vrcp.pop %v100
    %v109 = vrcp.pop %v101
    %v110 = vrcp.pop %v102
    %v111 = vmul.f32 %v56, %v103
    %v112 = vmul.f32 %v58, %v104
    %v113 = vmul.f32 %v60, %v105
    %v114 = vmul.f32 %v62, %v106
    %v115 = vmul.f32 %v64, %v107
    %v116 = vmul.f32 %v66, %v108
    %v117 = vmul.f32 %v68, %v109
    %v118 = vmul.f32 %v70, %v110
    %v127 = vrot.slane %v112, 7
    %vm128 = vcmask 1041409
    %v129 = vsel %vm128, %v127, %v111
    %v130 = vrot.slane %v113, 6
    %vm131 = vcmask 1042434
    %v132 = vsel %vm131, %v130, %v129
    %v133 = vrot.slane %v114, 5
    %vm134 = vcmask 1043459
    %v135 = vsel %vm134, %v133, %v132
    %v136 = vrot.slane %v116, 7
    %v137 = vsel %vm128, %v136, %v115
    %v138 = vrot.slane %v117, 6
    %v139 = vsel %vm131, %v138, %v137
    %v140 = vrot.slane %v118, 5
    %v141 = vsel %vm134, %v140, %v139
    %vm144 = vcmask 125952
    %145 = vst.msk [vmem:[#allocation5] sm:$0xf] %vm144, %v135
    %146 = vst.msk [vmem:[#allocation5 + $0x8] sm:$0xf] %vm144, %v141
    %v147 = vmul.f32 %v80, %v103
    %v148 = vmul.f32 %v82, %v104
    %v149 = vmul.f32 %v84, %v105
    %v150 = vmul.f32 %v86, %v106
    %v151 = vmul.f32 %v88, %v107
    %v152 = vmul.f32 %v90, %v108
    %v153 = vmul.f32 %v92, %v109
    %v154 = vmul.f32 %v94, %v110
    %v163 = vrot.slane %v148, 7
    %v164 = vsel %vm128, %v163, %v147
    %v165 = vrot.slane %v149, 6
    %v166 = vsel %vm131, %v165, %v164
    %v167 = vrot.slane %v150, 5
    %v168 = vsel %vm134, %v167, %v166
    %v169 = vrot.slane %v152, 7
    %v170 = vsel %vm128, %v169, %v151
    %v171 = vrot.slane %v153, 6
    %v172 = vsel %vm131, %v171, %v170
    %v173 = vrot.slane %v154, 5
    %v174 = vsel %vm134, %v173, %v172
    %s177 = scalar_lea.vmem [#allocation5], 4
    %178 = vst.msk [vmem:[%s177] sm:$0xf] %vm144, %v168
    %179 = vst.msk [vmem:[%s177 + $0x8] sm:$0xf] %vm144, %v174
    // Predicated region
    $region10: #{tpu_custom_call.1} parent=1 // pred_check
      _
    $region11: #{tpu_custom_call.1} parent=1 // pred_check_branch
      %181 = sbr.rel (0) target = $region13
    $region12: #{tpu_custom_call.1} parent=1 // pred_region
      %s183 = ssub.s32 256, 256
      %184 = vsyncadd [#allocation4], %s183
      %s185 = sshll.u32 [#allocation5], 4
      %s186 = int_to_ptr.vmem [resolvable:$true] %s185
      %191 = dma.vmem_to_hbm [thread:$0]  %s186, 256, %s1, [#allocation4], 64, 64, 4
    $region13: #{tpu_custom_call.1} parent=1 // pred_fallthru
      _
    // Predicated region
    $region14: #{tpu_custom_call.1} parent=1 // pred_check
      _
    $region15: #{tpu_custom_call.1} parent=1 // pred_check_branch
      %193 = sbr.rel (0) target = $region17
    $region16: #{tpu_custom_call.1} parent=1 // pred_region
      %194 = dma.done [#allocation4], 256
    $region17: #{tpu_custom_call.1} parent=1 // pred_fallthru
      _
    %195 = vsyncpa [#allocation3], 1
    %196 = vsyncpa [#allocation4], 1

</llo_original>
